<compile_context>
chip_gen: v7x
topology: tpu7x:2x2x1
jax: 0.10.0
libtpu: 0.0.40
codegen_flags: <defaults>
</compile_context>

<pallas_src>
import functools

import jax
import jax.numpy as jnp
from jax.experimental import pallas as pl
from jax.experimental.pallas import tpu as pltpu


_FEATURE_ALIGN = 256  # MXU-native granule on v6e/v7x (also valid on v5e)


def _round_up(n, m):
    return ((n + m - 1) // m) * m


def _cdiv(a, b):
    return (a + b - 1) // b


def _vmem_capacity_bytes():
    try:
        return int(pltpu.get_tpu_info().vmem_capacity_bytes)
    except Exception:
        return 64 * 1024 * 1024  # conservative: v7x per-TensorCore VMEM


def _footprint_bytes(tm, th, d_p, do_p, itemsize):
    """Explicit per-step VMEM footprint: double-buffered blocks, the f32
    accumulator scratch, and the f32 hidden intermediate + its down-cast."""
    dbuf = 2 * itemsize * (tm * d_p + d_p * th + th * do_p + tm * do_p)
    acc = 4 * tm * do_p
    hidden = 4 * tm * th + itemsize * tm * th
    return dbuf + acc + hidden


def _pick_th(h_p0, th_cap):
    """Largest multiple-of-256 divisor of h_p0 that is <= th_cap; otherwise a
    capped chunk with h_p0 re-padded up to a multiple of it."""
    best = None
    t = 256
    while t <= min(h_p0, th_cap):
        if h_p0 % t == 0:
            best = t
        t += 256
    if best is not None:
        return best, h_p0
    th = min(th_cap, h_p0)
    return th, _round_up(h_p0, th)


def _select_tiles(m, d_p, do_p, h, itemsize, tile_budget, tm_req, th_req):
    h_p0 = _round_up(h, _FEATURE_ALIGN)

    # Hidden chunk: as large as the budget allows (fewer grid steps).
    if th_req is not None:
        th_cap = max(128, _round_up(th_req, 128))
    else:
        th_cap = 1024
        while (th_cap > 256 and
               _footprint_bytes(256, min(th_cap, h_p0), d_p, do_p, itemsize)
               > tile_budget):
            th_cap //= 2
    th, h_p = _pick_th(h_p0, th_cap)

    # Row tile: biggest candidate that fits the budget.
    if tm_req is not None:
        tm = max(8, _round_up(tm_req, 8))
    else:
        tm = 8
        for cand in (1024, 896, 768, 640, 512, 448, 384, 320, 256,
                     192, 128, 96, 64, 32, 16, 8):
            if _footprint_bytes(cand, th, d_p, do_p, itemsize) <= tile_budget:
                tm = cand
                break

    # Keep >=2 row tiles so the "parallel" row axis can shard across the two
    # v7x TensorCores, and so tail padding of M stays small.
    m_p8 = _round_up(max(m, 1), 8)
    tm = max(8, min(tm, _round_up(_cdiv(m_p8, 2), 8)))
    m_p = _round_up(m_p8, tm)
    return tm, th, m_p, h_p


def _mlp_kernel(x_ref, w1_ref, w2_ref, o_ref, acc_ref):
    # x_ref:  (tm, D_p)     row tile of the input (resident across the H axis)
    # w1_ref: (D_p, th)     chunk of fc1 weight, pre-transposed to (in, out)
    # w2_ref: (th, Do_p)    chunk of fc2 weight, pre-transposed to (in, out)
    # o_ref:  (tm, Do_p)
    # acc_ref:(tm, Do_p)    f32 accumulator, resident across the H grid axis
    h = pl.program_id(1)

    @pl.when(h == 0)
    def _():
        acc_ref[...] = jnp.zeros_like(acc_ref)

    # fc1 chunk: MXU runs in the native input dtype, f32 accumulation.
    hidden = jnp.dot(x_ref[...], w1_ref[...],
                     preferred_element_type=jnp.float32)
    # act (ReLU) fused with the down-cast for the fc2 matmul; drop1 (p=0) = id.
    hidden = jnp.maximum(hidden, 0.0).astype(w2_ref.dtype)

    # fc2 chunk, accumulated over H chunks in f32; drop2 (p=0) = identity.
    acc_ref[...] += jnp.dot(hidden, w2_ref[...],
                            preferred_element_type=jnp.float32)

    @pl.when(h == pl.num_programs(1) - 1)
    def _():
        o_ref[...] = acc_ref[...].astype(o_ref.dtype)


@functools.partial(jax.jit, static_argnames=("tm", "th", "compute_dtype"))
def mlp_forward(x, w1_t, w2_t, *, tm=None, th=None, compute_dtype=None):
    """x: (..., D). w1_t: (D, H). w2_t: (H, Do). Returns (..., Do).

    tm/th: optional explicit tile overrides (auto-selected from VMEM budget
    when None).  compute_dtype: optionally cast x/W1/W2 (e.g. jnp.bfloat16)
    before the kernel; accumulation stays f32, output keeps x's dtype.
    """
    orig_shape = x.shape
    D = orig_shape[-1]
    H, Do = w1_t.shape[1], w2_t.shape[1]
    out_dtype = x.dtype

    if compute_dtype is not None:
        x = x.astype(compute_dtype)
        w1_t = w1_t.astype(compute_dtype)
        w2_t = w2_t.astype(compute_dtype)

    x2d = x.reshape(-1, D)
    M = x2d.shape[0]
    itemsize = jnp.dtype(x2d.dtype).itemsize

    vmem_cap = _vmem_capacity_bytes()
    tile_budget = (vmem_cap * 11) // 16   # what we size tiles against
    vmem_limit = (vmem_cap * 7) // 8      # headroom for compiler scratch

    D_p = _round_up(D, _FEATURE_ALIGN)
    Do_p = _round_up(Do, _FEATURE_ALIGN)
    tm_eff, th_eff, M_p, H_p = _select_tiles(
        M, D_p, Do_p, H, itemsize, tile_budget, tm, th)

    # Zero padding is exact: padded x cols x padded W1 rows contribute 0,
    # padded hidden units have zero W1 cols (ReLU(0)=0) and zero W2 rows,
    # padded output rows/cols are sliced off below.  Pads are skipped when the
    # dims are already aligned.
    x_p = x2d if (M_p, D_p) == (M, D) else jnp.pad(
        x2d, ((0, M_p - M), (0, D_p - D)))
    w1_p = w1_t if (D_p, H_p) == (D, H) else jnp.pad(
        w1_t, ((0, D_p - D), (0, H_p - H)))
    w2_p = w2_t if (H_p, Do_p) == (H, Do) else jnp.pad(
        w2_t, ((0, H_p - H), (0, Do_p - Do)))

    num_row_tiles = M_p // tm_eff
    cost = pl.CostEstimate(
        flops=2 * M_p * H_p * (D_p + Do_p),
        transcendentals=0,
        # Weights are re-streamed from HBM once per row tile.
        bytes_accessed=(itemsize * (M_p * D_p
                                    + num_row_tiles * H_p * (D_p + Do_p))
                        + jnp.dtype(out_dtype).itemsize * M_p * Do_p),
    )

    out = pl.pallas_call(
        _mlp_kernel,
        out_shape=jax.ShapeDtypeStruct((M_p, Do_p), out_dtype),
        grid_spec=pltpu.PrefetchScalarGridSpec(
            num_scalar_prefetch=0,
            grid=(num_row_tiles, H_p // th_eff),
            in_specs=[
                pl.BlockSpec((tm_eff, D_p), lambda i, h: (i, 0)),     # x tile
                pl.BlockSpec((D_p, th_eff), lambda i, h: (0, h)),     # fc1 chunk
                pl.BlockSpec((th_eff, Do_p), lambda i, h: (h, 0)),    # fc2 chunk
            ],
            out_specs=pl.BlockSpec((tm_eff, Do_p), lambda i, h: (i, 0)),
            scratch_shapes=[pltpu.VMEM((tm_eff, Do_p), jnp.float32)],
        ),
        compiler_params=pltpu.CompilerParams(
            dimension_semantics=("parallel", "arbitrary"),
            vmem_limit_bytes=int(vmem_limit)),
        cost_estimate=cost,
    )(x_p, w1_p, w2_p)

    return out[:M, :Do].reshape(*orig_shape[:-1], Do)


def init_mlp_params(key, dim, mlp_ratio=4, out_features=None, dtype=jnp.float32):
    """Deterministic synthetic init matching nn.Linear shapes (bias=False)."""
    out_features = out_features or dim
    hidden = int(mlp_ratio * dim)
    k1, k2 = jax.random.split(key)
    # PyTorch nn.Linear stores (out, in); we keep the transposed (in, out) form.
    bound1 = 1.0 / (dim ** 0.5)
    bound2 = 1.0 / (hidden ** 0.5)
    w1_t = jax.random.uniform(k1, (dim, hidden), dtype, -bound1, bound1)
    w2_t = jax.random.uniform(k2, (hidden, out_features), dtype, -bound2, bound2)
    return w1_t, w2_t


if __name__ == "__main__":
    key = jax.random.PRNGKey(0)
    kx, kp = jax.random.split(key)

    batch, seq, dim = 2, 8, 32          # hidden = 4 * 32 = 128
    x = jax.random.normal(kx, (batch, seq, dim), dtype=jnp.float32)
    w1_t, w2_t = init_mlp_params(kp, dim, mlp_ratio=4)

    # Reference in plain JAX (same math).
    y_ref = jnp.maximum(x @ w1_t, 0.0) @ w2_t

    # f32 path (exact vs. reference).
    y = jax.block_until_ready(mlp_forward(x, w1_t, w2_t))
    assert y.shape == (batch, seq, dim)
    assert jnp.allclose(y, y_ref, atol=1e-5, rtol=1e-5)

    # bf16 compute path (production recipe: bf16 MXU inputs, f32 accumulation).
    y_bf = jax.block_until_ready(
        mlp_forward(x, w1_t, w2_t, compute_dtype=jnp.bfloat16))
    assert y_bf.shape == (batch, seq, dim)
    assert jnp.allclose(y_bf, y_ref, atol=0.2, rtol=0.05)

    print("KERNEL_OK")
</pallas_src>

<mosaic_0001>
module attributes {stable_mosaic.version = 11 : i64} {
  func.func @_mlp_kernel(%arg0: i32, %arg1: i32, %arg2: memref<8x256xf32, #tpu.memory_space<vmem>>, %arg3: memref<256x256xf32, #tpu.memory_space<vmem>>, %arg4: memref<256x256xf32, #tpu.memory_space<vmem>>, %arg5: memref<8x256xf32, #tpu.memory_space<vmem>>, %arg6: memref<8x256xf32, #tpu.memory_space<vmem>>) attributes {dimension_semantics = [#tpu.dimension_semantics<parallel>, #tpu.dimension_semantics<arbitrary>], iteration_bounds = array<i64: 2, 1>, scalar_prefetch = 0 : i64, scratch_operands = 1 : i64, tpu.core_type = #tpu.core_type<tc>, window_params = [{transform_indices = @transform_0, window_bounds = array<i64: 8, 256>}, {transform_indices = @transform_1, window_bounds = array<i64: 256, 256>}, {transform_indices = @transform_2, window_bounds = array<i64: 256, 256>}, {transform_indices = @transform_3, window_bounds = array<i64: 8, 256>}]} {
    %c0_i32 = arith.constant 0 : i32
    %0 = arith.cmpi eq, %arg1, %c0_i32 : i32
    %1 = arith.extui %0 : i1 to i32
    %c0_i32_0 = arith.constant 0 : i32
    %2 = arith.cmpi ne, %1, %c0_i32_0 : i32
    scf.if %2 {
      %cst_14 = arith.constant 0.000000e+00 : f32
      %16 = vector.broadcast %cst_14 : f32 to vector<8x256xf32>
      %c0_15 = arith.constant 0 : index
      %c0_16 = arith.constant 0 : index
      %17 = vector.load %arg6[%c0_15, %c0_16] : memref<8x256xf32, #tpu.memory_space<vmem>>, vector<8x256xf32>
      tpu.vector_store %arg6[%c0_15, %c0_16], %16 {strides = array<i32>} : memref<8x256xf32, #tpu.memory_space<vmem>>, vector<8x256xf32>,
    } else {
    }
    %c0 = arith.constant 0 : index
    %c0_1 = arith.constant 0 : index
    %3 = vector.load %arg2[%c0, %c0_1] : memref<8x256xf32, #tpu.memory_space<vmem>>, vector<8x256xf32>
    %c0_2 = arith.constant 0 : index
    %c0_3 = arith.constant 0 : index
    %4 = vector.load %arg3[%c0_2, %c0_3] : memref<256x256xf32, #tpu.memory_space<vmem>>, vector<256x256xf32>
    %cst = arith.constant dense<0.000000e+00> : vector<8x256xf32>
    %5 = tpu.matmul %3, %4, %cst {dimension_numbers = #tpu.dot_dimension_numbers<[1], [0], [0], [1], [0, 0, 1, 1], [], []>} : vector<8x256xf32>, vector<256x256xf32>, vector<8x256xf32> -> vector<8x256xf32>
    %cst_4 = arith.constant 0.000000e+00 : f32
    %6 = vector.broadcast %cst_4 : f32 to vector<8x256xf32>
    %7 = arith.maximumf %5, %6 : vector<8x256xf32>
    %c0_5 = arith.constant 0 : index
    %c0_6 = arith.constant 0 : index
    %8 = vector.load %arg6[%c0_5, %c0_6] : memref<8x256xf32, #tpu.memory_space<vmem>>, vector<8x256xf32>
    %c0_7 = arith.constant 0 : index
    %c0_8 = arith.constant 0 : index
    %9 = vector.load %arg4[%c0_7, %c0_8] : memref<256x256xf32, #tpu.memory_space<vmem>>, vector<256x256xf32>
    %cst_9 = arith.constant dense<0.000000e+00> : vector<8x256xf32>
    %10 = tpu.matmul %7, %9, %cst_9 {dimension_numbers = #tpu.dot_dimension_numbers<[1], [0], [0], [1], [0, 0, 1, 1], [], []>} : vector<8x256xf32>, vector<256x256xf32>, vector<8x256xf32> -> vector<8x256xf32>
    %11 = arith.addf %8, %10 : vector<8x256xf32>
    %c0_10 = arith.constant 0 : index
    %c0_11 = arith.constant 0 : index
    %12 = vector.load %arg6[%c0_10, %c0_11] : memref<8x256xf32, #tpu.memory_space<vmem>>, vector<8x256xf32>
    tpu.vector_store %arg6[%c0_10, %c0_11], %11 {strides = array<i32>} : memref<8x256xf32, #tpu.memory_space<vmem>>, vector<8x256xf32>,
    %c0_i32_12 = arith.constant 0 : i32
    %13 = arith.cmpi eq, %arg1, %c0_i32_12 : i32
    %14 = arith.extui %13 : i1 to i32
    %c0_i32_13 = arith.constant 0 : i32
    %15 = arith.cmpi ne, %14, %c0_i32_13 : i32
    scf.if %15 {
      %c0_14 = arith.constant 0 : index
      %c0_15 = arith.constant 0 : index
      %16 = vector.load %arg6[%c0_14, %c0_15] : memref<8x256xf32, #tpu.memory_space<vmem>>, vector<8x256xf32>
      %c0_16 = arith.constant 0 : index
      %c0_17 = arith.constant 0 : index
      %17 = vector.load %arg5[%c0_16, %c0_17] : memref<8x256xf32, #tpu.memory_space<vmem>>, vector<8x256xf32>
      tpu.vector_store %arg5[%c0_16, %c0_17], %16 {strides = array<i32>} : memref<8x256xf32, #tpu.memory_space<vmem>>, vector<8x256xf32>,
    } else {
    }
    return
  }
  func.func @transform_0(%arg0: i32, %arg1: i32) -> (i32, i32) {
    %c0_i32 = arith.constant 0 : i32
    %c0_i32_0 = arith.constant 0 : i32
    return %arg0, %c0_i32 : i32, i32
  }
  func.func @transform_1(%arg0: i32, %arg1: i32) -> (i32, i32) {
    %c0_i32 = arith.constant 0 : i32
    %c0_i32_0 = arith.constant 0 : i32
    return %c0_i32, %arg1 : i32, i32
  }
  func.func @transform_2(%arg0: i32, %arg1: i32) -> (i32, i32) {
    %c0_i32 = arith.constant 0 : i32
    %c0_i32_0 = arith.constant 0 : i32
    return %arg1, %c0_i32 : i32, i32
  }
  func.func @transform_3(%arg0: i32, %arg1: i32) -> (i32, i32) {
    %c0_i32 = arith.constant 0 : i32
    %c0_i32_0 = arith.constant 0 : i32
    return %arg0, %c0_i32 : i32, i32
  }
}

</mosaic_0001>

<llo_original>
// kernel: mlp_forward.1
$region0: #{mlp_forward.1}
  #allocation0 [shape = 'u32[]', space=smem, size = 0x4, offset = 0x4, fixed_abs, tag = 'smem constant byte address 0x4 - core index']
  #allocation1 [shape = 'u32[144,128]{1,0:T(1,128)}', space=vmem, size = 0x12000, scoped, tag = 'internal scratch']
  #allocation2 [shape = 'f32[8,256]{1,0:T(8,128)}', space=vmem, size = 0x2000, scoped, tag = 'scratch operand']
  %s0 = inlined_call_operand.vmem [shape: f32[16,256], index: 0, kind: input, shape index: {}]
  %s1 = inlined_call_operand.vmem [shape: f32[256,256], index: 1, kind: input, shape index: {}]
  %s2 = inlined_call_operand.vmem [shape: f32[256,256], index: 2, kind: input, shape index: {}]
  %s3 = inlined_call_operand.vmem [shape: f32[16,256], index: 3, kind: output, shape index: {}]
  %s4 = sld [smem:[#allocation0]]
  $region53: #{mlp_forward.1} parent=0
    _
  %s6 = ssub.s32 1, %s4
  %s7 = scalar_select 0, %s6, %s4
  loop: start=0, step=1, limit=4
  $region2: #{mlp_forward.1} parent=0 // loop_pre_header
    _
  $region3: #{mlp_forward.1} parent=0 // loop_header
    %s9 = sphi 0, %s13
    %p10 = scmp.ge.s32.totalorder %s9, 4
    %s16 = sphi 0, %s28
    %s17 = sphi 0, %s24
    %s18 = sphi 0, %s16
    %s19 = sphi 0, %s17
    %s20 = sphi 0, %s18
    %s21 = sphi 0, %s19
    %s31 = sphi 0, %s33
    %s34 = sphi 0, %s31
    %s35 = sphi 0, %s34
    %s51 = sphi 0, %s35
    %s57 = sphi 0, %s59
    %s60 = sphi 0, %s57
    %s61 = sphi 0, %s60
    %s77 = sphi 0, %s61
    %s83 = sphi 0, %s85
    %s86 = sphi 0, %s83
    %s87 = sphi 0, %s86
    %s103 = sphi 0, %s87
    %s109 = sphi 0, %s111
    %s112 = sphi 0, %s109
    %s113 = sphi 0, %s112
    %s129 = sphi 0, %s113
  $region4: #{mlp_forward.1} parent=0 // loop_header_branch
    %12 = sbr.rel (%p10) target = $region8
  $region5: #{mlp_forward.1} parent=0 // loop_body
    %s14 = ssub.s32 %s9, 1
    %s15 = ssub.s32 %s9, 2
    %s22 = sadd.s32 1, %s17
    %p23 = scmp.ge.s32.totalorder %s22, 1
    %s24 = scalar_select %p23, 0, %s22
    %s25 = sadd.s32 1, %s16
    %s26 = scalar_select %p23, %s25, %s16
    %p27 = scmp.ge.s32.totalorder %s26, 2
    %s28 = scalar_select %p27, 0, %s26
    %s29 = ssub.s32 %s16, %s28
    %p30 = scmp.eq.s32.totalorder %s29, 0
    %s32 = sadd.s32 %s31, 1
    %s33 = scalar_select %p30, %s31, %s32
    %p36 = pneg %p30
    %p37 = scmp.eq.s32.totalorder %s9, 1
    %p38 = por %p36, %p37
    %p39 = scmp.ne.s32.totalorder %s31, %s34
    %p40 = scmp.eq.s32.totalorder %s9, 0
    %p41 = por %p39, %p40
    %p42 = scmp.ne.s32.totalorder %s31, %s34
    %p43 = scmp.eq.s32.totalorder %s14, 1
    %p44 = por %p42, %p43
    %p45 = scmp.ne.s32.totalorder %s34, %s35
    %p46 = scmp.eq.s32.totalorder %s14, 0
    %p47 = por %p45, %p46
    %p48 = scmp.ne.s32.totalorder %s34, %s35
    %p49 = scmp.eq.s32.totalorder %s15, 1
    %p50 = por %p48, %p49
    %p52 = scmp.ne.s32.totalorder %s35, %s51
    %p53 = scmp.eq.s32.totalorder %s15, 0
    %p54 = por %p52, %p53
    %s55 = ssub.s32 %s17, %s24
    %p56 = scmp.eq.s32.totalorder %s55, 0
    %s58 = sadd.s32 %s57, 1
    %s59 = scalar_select %p56, %s57, %s58
    %p62 = pneg %p56
    %p63 = scmp.eq.s32.totalorder %s9, 1
    %p64 = por %p62, %p63
    %p65 = scmp.ne.s32.totalorder %s57, %s60
    %p66 = scmp.eq.s32.totalorder %s9, 0
    %p67 = por %p65, %p66
    %p68 = scmp.ne.s32.totalorder %s57, %s60
    %p69 = scmp.eq.s32.totalorder %s14, 1
    %p70 = por %p68, %p69
    %p71 = scmp.ne.s32.totalorder %s60, %s61
    %p72 = scmp.eq.s32.totalorder %s14, 0
    %p73 = por %p71, %p72
    %p74 = scmp.ne.s32.totalorder %s60, %s61
    %p75 = scmp.eq.s32.totalorder %s15, 1
    %p76 = por %p74, %p75
    %p78 = scmp.ne.s32.totalorder %s61, %s77
    %p79 = scmp.eq.s32.totalorder %s15, 0
    %p80 = por %p78, %p79
    %s81 = ssub.s32 %s17, %s24
    %p82 = scmp.eq.s32.totalorder %s81, 0
    %s84 = sadd.s32 %s83, 1
    %s85 = scalar_select %p82, %s83, %s84
    %p88 = pneg %p82
    %p89 = scmp.eq.s32.totalorder %s9, 1
    %p90 = por %p88, %p89
    %p91 = scmp.ne.s32.totalorder %s83, %s86
    %p92 = scmp.eq.s32.totalorder %s9, 0
    %p93 = por %p91, %p92
    %p94 = scmp.ne.s32.totalorder %s83, %s86
    %p95 = scmp.eq.s32.totalorder %s14, 1
    %p96 = por %p94, %p95
    %p97 = scmp.ne.s32.totalorder %s86, %s87
    %p98 = scmp.eq.s32.totalorder %s14, 0
    %p99 = por %p97, %p98
    %p100 = scmp.ne.s32.totalorder %s86, %s87
    %p101 = scmp.eq.s32.totalorder %s15, 1
    %p102 = por %p100, %p101
    %p104 = scmp.ne.s32.totalorder %s87, %s103
    %p105 = scmp.eq.s32.totalorder %s15, 0
    %p106 = por %p104, %p105
    %s107 = ssub.s32 %s16, %s28
    %p108 = scmp.eq.s32.totalorder %s107, 0
    %s110 = sadd.s32 %s109, 1
    %s111 = scalar_select %p108, %s109, %s110
    %p114 = pneg %p108
    %p115 = scmp.eq.s32.totalorder %s9, 1
    %p116 = por %p114, %p115
    %p117 = scmp.ne.s32.totalorder %s109, %s112
    %p118 = scmp.eq.s32.totalorder %s9, 0
    %p119 = por %p117, %p118
    %p120 = scmp.ne.s32.totalorder %s109, %s112
    %p121 = scmp.eq.s32.totalorder %s14, 1
    %p122 = por %p120, %p121
    %p123 = scmp.ne.s32.totalorder %s112, %s113
    %p124 = scmp.eq.s32.totalorder %s14, 0
    %p125 = por %p123, %p124
    %p126 = scmp.ne.s32.totalorder %s112, %s113
    %p127 = scmp.eq.s32.totalorder %s15, 1
    %p128 = por %p126, %p127
    %p130 = scmp.ne.s32.totalorder %s113, %s129
    %p131 = scmp.eq.s32.totalorder %s15, 0
    %p132 = por %p130, %p131
    %p133 = scmp.le.s32.totalorder 1, %s9
    %p134 = scmp.lt.s32.totalorder %s9, 3
    %p135 = pnand %p133, %p134
    %p136 = pneg %p135
    // Predicated region
    $region9: #{mlp_forward.1} parent=5 // pred_check
      _
    $region10: #{mlp_forward.1} parent=5 // pred_check_branch
      %138 = sbr.rel (%p135) target = $region12
    $region11: #{mlp_forward.1} parent=5 // pred_region
      %s139 = ssub.s32 %s9, 1
      // Predicated region
      $region13: #{mlp_forward.1} parent=11 // pred_check
        %p140 = pneg %p73
      $region14: #{mlp_forward.1} parent=11 // pred_check_branch
        %142 = sbr.rel (%p140) target = $region16
      $region15: #{mlp_forward.1} parent=11 // pred_region
        %s143 = smul.u32 2, %s19
        %p144 = scmp.lt.s32.totalorder %s143, 1
        %s145 = scalar_select %p144, %s143, 1
        %s146 = smul.addr %s145, 8
        %s147 = scalar_lea.vmem %s1, %s146
        %s148 = smul.u32 2, %s19
      $region16: #{mlp_forward.1} parent=11 // pred_fallthru
        _
      // Predicated region
      $region17: #{mlp_forward.1} parent=11 // pred_check
        %p149 = pneg %p99
      $region18: #{mlp_forward.1} parent=11 // pred_check_branch
        %151 = sbr.rel (%p149) target = $region20
      $region19: #{mlp_forward.1} parent=11 // pred_region
        %s152 = smul.u32 32, %s19
        %p153 = scmp.lt.s32.totalorder %s152, 31
        %s154 = scalar_select %p153, %s152, 31
        %s155 = smul.addr %s154, 2
        %s156 = smul.addr %s155, 8
        %s157 = scalar_lea.vmem %s2, %s156
        %s158 = smul.u32 32, %s19
      $region20: #{mlp_forward.1} parent=11 // pred_fallthru
        _
    $region12: #{mlp_forward.1} parent=5 // pred_fallthru
      _
    %p159 = scmp.lt.s32.totalorder %s9, 2
    // Predicated region
    $region21: #{mlp_forward.1} parent=5 // pred_check
      %p160 = pneg %p159
    $region22: #{mlp_forward.1} parent=5 // pred_check_branch
      %162 = sbr.rel (%p160) target = $region24
    $region23: #{mlp_forward.1} parent=5 // pred_region
      // Predicated region
      $region25: #{mlp_forward.1} parent=23 // pred_check
        %p163 = pneg %p41
      $region26: #{mlp_forward.1} parent=23 // pred_check_branch
        %165 = sbr.rel (%p163) target = $region28
      $region27: #{mlp_forward.1} parent=23 // pred_region
        %p166 = scmp.lt.s32.totalorder %s16, 1
        %s167 = scalar_select %p166, %s16, 1
        %s168 = smul.addr %s167, 2
        %s169 = smul.addr %s168, 8
        %s170 = scalar_lea.vmem %s0, %s169
      $region28: #{mlp_forward.1} parent=23 // pred_fallthru
        _
    $region24: #{mlp_forward.1} parent=5 // pred_fallthru
      _
    %p171 = scmp.le.s32.totalorder 1, %s9
    %p172 = scmp.lt.s32.totalorder %s9, 3
    %p173 = pnand %p171, %p172
    %p174 = pneg %p173
    // Predicated region
    $region29: #{mlp_forward.1} parent=5 // pred_check
      _
    $region30: #{mlp_forward.1} parent=5 // pred_check_branch
      %176 = sbr.rel (%p173) target = $region32
    $region31: #{mlp_forward.1} parent=5 // pred_region
      %s177 = ssub.s32 %s9, 1
      %p178 = scmp.lt.s32.totalorder %s18, 1
      %s179 = scalar_select %p178, %s18, 1
      %s180 = smul.addr %s179, 2
      %s181 = smul.addr %s180, 8
      %s182 = scalar_lea.vmem %s0, %s181
      %p183 = pneg %p47
      %p184 = pneg %p44
      %s185 = smul.u32 2, %s19
      %p186 = scmp.lt.s32.totalorder %s185, 1
      %s187 = scalar_select %p186, %s185, 1
      %s188 = smul.addr %s187, 8
      %s189 = scalar_lea.vmem %s1, %s188
      %p190 = pneg %p73
      %p191 = pneg %p70
      %s192 = smul.u32 32, %s19
      %p193 = scmp.lt.s32.totalorder %s192, 31
      %s194 = scalar_select %p193, %s192, 31
      %s195 = smul.addr %s194, 2
      %s196 = smul.addr %s195, 8
      %s197 = scalar_lea.vmem %s2, %s196
      %p198 = pneg %p99
      %p199 = pneg %p96
      %p200 = pneg %p125
      %p201 = pneg %p122
      %p202 = scmp.lt.s32.totalorder %s18, 1
      %s203 = scalar_select %p202, %s18, 1
      %s204 = smul.addr %s203, 2
      %s205 = smul.addr %s204, 8
      %s206 = scalar_lea.vmem %s3, %s205
      %p207 = scmp.lt.s32.totalorder %s18, 1
      %s208 = scalar_select %p207, %s18, 1
      %s209 = smul.addr %s208, 2
      %s210 = smul.addr %s209, 8
      %s211 = scalar_lea.vmem %s0, %s210
      %s212 = smul.u32 2, %s19
      %p213 = scmp.lt.s32.totalorder %s212, 1
      %s214 = scalar_select %p213, %s212, 1
      %s215 = smul.addr %s214, 8
      %s216 = scalar_lea.vmem %s1, %s215
      %s217 = smul.u32 2, %s19
      %s218 = smul.u32 32, %s19
      %p219 = scmp.lt.s32.totalorder %s218, 31
      %s220 = scalar_select %p219, %s218, 31
      %s221 = smul.addr %s220, 2
      %s222 = smul.addr %s221, 8
      %s223 = scalar_lea.vmem %s2, %s222
      %s224 = smul.u32 32, %s19
      %p225 = scmp.lt.s32.totalorder %s18, 1
      %s226 = scalar_select %p225, %s18, 1
      %s227 = smul.addr %s226, 2
      %s228 = smul.addr %s227, 8
      %s229 = scalar_lea.vmem %s3, %s228
      %p230 = scmp.eq.s32.totalorder %s19, 0
      // Predicated region
      $region33: #{mlp_forward.1} parent=31 // pred_check
        %p231 = pneg %p230
      $region34: #{mlp_forward.1} parent=31 // pred_check_branch
        %233 = sbr.rel (%p231) target = $region36
      $region35: #{mlp_forward.1} parent=31 // pred_region
        %234 = vst [vmem:[#allocation2] sm:$0xff] 0.0
        %235 = vst [vmem:[#allocation2 + $0x8] sm:$0xff] 0.0
      $region36: #{mlp_forward.1} parent=31 // pred_fallthru
        _
      %v236 = vld [vmem:[%s211] sm:$0xff]
      %v237 = vld [vmem:[%s211 + $0x8] sm:$0xff]
      %v238 = vld [vmem:[%s216] sm:$0xff]
      %v239 = vld [vmem:[%s216 + $0x8] sm:$0xff]
      %v240 = vld [vmem:[%s216 + $0x10] sm:$0xff]
      %v241 = vld [vmem:[%s216 + $0x18] sm:$0xff]
      %v242 = vld [vmem:[%s216 + $0x20] sm:$0xff]
      %v243 = vld [vmem:[%s216 + $0x28] sm:$0xff]
      %v244 = vld [vmem:[%s216 + $0x30] sm:$0xff]
      %v245 = vld [vmem:[%s216 + $0x38] sm:$0xff]
      %v246 = vld [vmem:[%s216 + $0x40] sm:$0xff]
      %v247 = vld [vmem:[%s216 + $0x48] sm:$0xff]
      %v248 = vld [vmem:[%s216 + $0x50] sm:$0xff]
      %v249 = vld [vmem:[%s216 + $0x58] sm:$0xff]
      %v250 = vld [vmem:[%s216 + $0x60] sm:$0xff]
      %v251 = vld [vmem:[%s216 + $0x68] sm:$0xff]
      %v252 = vld [vmem:[%s216 + $0x70] sm:$0xff]
      %v253 = vld [vmem:[%s216 + $0x78] sm:$0xff]
      %v254 = vld [vmem:[%s216 + $0x80] sm:$0xff]
      %v255 = vld [vmem:[%s216 + $0x88] sm:$0xff]
      %v256 = vld [vmem:[%s216 + $0x90] sm:$0xff]
      %v257 = vld [vmem:[%s216 + $0x98] sm:$0xff]
      %v258 = vld [vmem:[%s216 + $0xa0] sm:$0xff]
      %v259 = vld [vmem:[%s216 + $0xa8] sm:$0xff]
      %v260 = vld [vmem:[%s216 + $0xb0] sm:$0xff]
      %v261 = vld [vmem:[%s216 + $0xb8] sm:$0xff]
      %v262 = vld [vmem:[%s216 + $0xc0] sm:$0xff]
      %v263 = vld [vmem:[%s216 + $0xc8] sm:$0xff]
      %v264 = vld [vmem:[%s216 + $0xd0] sm:$0xff]
      %v265 = vld [vmem:[%s216 + $0xd8] sm:$0xff]
      %v266 = vld [vmem:[%s216 + $0xe0] sm:$0xff]
      %v267 = vld [vmem:[%s216 + $0xe8] sm:$0xff]
      %v268 = vld [vmem:[%s216 + $0xf0] sm:$0xff]
      %v269 = vld [vmem:[%s216 + $0xf8] sm:$0xff]
      %v270 = vld [vmem:[%s216 + $0x100] sm:$0xff]
      %v271 = vld [vmem:[%s216 + $0x108] sm:$0xff]
      %v272 = vld [vmem:[%s216 + $0x110] sm:$0xff]
      %v273 = vld [vmem:[%s216 + $0x118] sm:$0xff]
      %v274 = vld [vmem:[%s216 + $0x120] sm:$0xff]
      %v275 = vld [vmem:[%s216 + $0x128] sm:$0xff]
      %v276 = vld [vmem:[%s216 + $0x130] sm:$0xff]
      %v277 = vld [vmem:[%s216 + $0x138] sm:$0xff]
      %v278 = vld [vmem:[%s216 + $0x140] sm:$0xff]
      %v279 = vld [vmem:[%s216 + $0x148] sm:$0xff]
      %v280 = vld [vmem:[%s216 + $0x150] sm:$0xff]
      %v281 = vld [vmem:[%s216 + $0x158] sm:$0xff]
      %v282 = vld [vmem:[%s216 + $0x160] sm:$0xff]
      %v283 = vld [vmem:[%s216 + $0x168] sm:$0xff]
      %v284 = vld [vmem:[%s216 + $0x170] sm:$0xff]
      %v285 = vld [vmem:[%s216 + $0x178] sm:$0xff]
      %v286 = vld [vmem:[%s216 + $0x180] sm:$0xff]
      %v287 = vld [vmem:[%s216 + $0x188] sm:$0xff]
      %v288 = vld [vmem:[%s216 + $0x190] sm:$0xff]
      %v289 = vld [vmem:[%s216 + $0x198] sm:$0xff]
      %v290 = vld [vmem:[%s216 + $0x1a0] sm:$0xff]
      %v291 = vld [vmem:[%s216 + $0x1a8] sm:$0xff]
      %v292 = vld [vmem:[%s216 + $0x1b0] sm:$0xff]
      %v293 = vld [vmem:[%s216 + $0x1b8] sm:$0xff]
      %v294 = vld [vmem:[%s216 + $0x1c0] sm:$0xff]
      %v295 = vld [vmem:[%s216 + $0x1c8] sm:$0xff]
      %v296 = vld [vmem:[%s216 + $0x1d0] sm:$0xff]
      %v297 = vld [vmem:[%s216 + $0x1d8] sm:$0xff]
      %v298 = vld [vmem:[%s216 + $0x1e0] sm:$0xff]
      %v299 = vld [vmem:[%s216 + $0x1e8] sm:$0xff]
      %v300 = vld [vmem:[%s216 + $0x1f0] sm:$0xff]
      %v301 = vld [vmem:[%s216 + $0x1f8] sm:$0xff]
      %302 = vmatprep.subr.mxu0 %v239
      %303 = vmatpush1.msra.mxu0 %v238
      %304 = vmatprep.subr.mxu0 %v241
      %305 = vmatpush1.msra.mxu0 %v240
      %306 = vmatprep.subr.mxu0 %v243
      %307 = vmatpush1.msra.mxu0 %v242
      %308 = vmatprep.subr.mxu0 %v245
      %309 = vmatpush1.msra.mxu0 %v244
      %310 = vmatprep.subr.mxu0 %v247
      %311 = vmatpush1.msra.mxu0 %v246
      %312 = vmatprep.subr.mxu0 %v249
      %313 = vmatpush1.msra.mxu0 %v248
      %314 = vmatprep.subr.mxu0 %v251
      %315 = vmatpush1.msra.mxu0 %v250
      %316 = vmatprep.subr.mxu0 %v253
      %317 = vmatpush1.msra.mxu0 %v252
      %318 = vmatprep.subr.mxu0 %v255
      %319 = vmatpush1.msra.mxu0 %v254
      %320 = vmatprep.subr.mxu0 %v257
      %321 = vmatpush1.msra.mxu0 %v256
      %322 = vmatprep.subr.mxu0 %v259
      %323 = vmatpush1.msra.mxu0 %v258
      %324 = vmatprep.subr.mxu0 %v261
      %325 = vmatpush1.msra.mxu0 %v260
      %326 = vmatprep.subr.mxu0 %v263
      %327 = vmatpush1.msra.mxu0 %v262
      %328 = vmatprep.subr.mxu0 %v265
      %329 = vmatpush1.msra.mxu0 %v264
      %330 = vmatprep.subr.mxu0 %v267
      %331 = vmatpush1.msra.mxu0 %v266
      %332 = vmatprep.subr.mxu0 %v269
      %333 = vmatpush1.msra.mxu0 %v268
      %334 = vmatprep.subr.mxu0 %v271
      %335 = vmatpush1.msra.mxu0 %v270
      %336 = vmatprep.subr.mxu0 %v273
      %337 = vmatpush1.msra.mxu0 %v272
      %338 = vmatprep.subr.mxu0 %v275
      %339 = vmatpush1.msra.mxu0 %v274
      %340 = vmatprep.subr.mxu0 %v277
      %341 = vmatpush1.msra.mxu0 %v276
      %342 = vmatprep.subr.mxu0 %v279
      %343 = vmatpush1.msra.mxu0 %v278
      %344 = vmatprep.subr.mxu0 %v281
      %345 = vmatpush1.msra.mxu0 %v280
      %346 = vmatprep.subr.mxu0 %v283
      %347 = vmatpush1.msra.mxu0 %v282
      %348 = vmatprep.subr.mxu0 %v285
      %349 = vmatpush1.msra.mxu0 %v284
      %350 = vmatprep.subr.mxu0 %v287
      %351 = vmatpush1.msra.mxu0 %v286
      %352 = vmatprep.subr.mxu0 %v289
      %353 = vmatpush1.msra.mxu0 %v288
      %354 = vmatprep.subr.mxu0 %v291
      %355 = vmatpush1.msra.mxu0 %v290
      %356 = vmatprep.subr.mxu0 %v293
      %357 = vmatpush1.msra.mxu0 %v292
      %358 = vmatprep.subr.mxu0 %v295
      %359 = vmatpush1.msra.mxu0 %v294
      %360 = vmatprep.subr.mxu0 %v297
      %361 = vmatpush1.msra.mxu0 %v296
      %362 = vmatprep.subr.mxu0 %v299
      %363 = vmatpush1.msra.mxu0 %v298
      %364 = vmatprep.subr.mxu0 %v301
      %365 = vmatpush1.msra.mxu0 %v300
      %366 = vmatprep.mubr.f32.mxu0 %v237
      %367 = vmatmul.mubr.f32.gmra.mrb[0].mxu0 %v236
      %v368 = vpop.f32.mrb[0].mxu0
      %v369 = vadd.f32 0.0, %v368
      %v370 = vpop.f32.mrb[0].mxu0
      %v371 = vadd.f32 0.0, %v370
      %372 = vdwg.mxu0
      %v373 = vmax.f32 %v369, 0.0
      %v374 = vmax.f32 %v371, 0.0
      %v375 = vld [vmem:[#allocation2] sm:$0xff]
      %v376 = vld [vmem:[#allocation2 + $0x8] sm:$0xff]
      %v377 = vld [vmem:[%s223] sm:$0xff]
      %v378 = vld [vmem:[%s223 + $0x8] sm:$0xff]
      %v379 = vld [vmem:[%s223 + $0x10] sm:$0xff]
      %v380 = vld [vmem:[%s223 + $0x18] sm:$0xff]
      %v381 = vld [vmem:[%s223 + $0x20] sm:$0xff]
      %v382 = vld [vmem:[%s223 + $0x28] sm:$0xff]
      %v383 = vld [vmem:[%s223 + $0x30] sm:$0xff]
      %v384 = vld [vmem:[%s223 + $0x38] sm:$0xff]
      %v385 = vld [vmem:[%s223 + $0x40] sm:$0xff]
      %v386 = vld [vmem:[%s223 + $0x48] sm:$0xff]
      %v387 = vld [vmem:[%s223 + $0x50] sm:$0xff]
      %v388 = vld [vmem:[%s223 + $0x58] sm:$0xff]
      %v389 = vld [vmem:[%s223 + $0x60] sm:$0xff]
      %v390 = vld [vmem:[%s223 + $0x68] sm:$0xff]
      %v391 = vld [vmem:[%s223 + $0x70] sm:$0xff]
      %v392 = vld [vmem:[%s223 + $0x78] sm:$0xff]
      %v393 = vld [vmem:[%s223 + $0x80] sm:$0xff]
      %v394 = vld [vmem:[%s223 + $0x88] sm:$0xff]
      %v395 = vld [vmem:[%s223 + $0x90] sm:$0xff]
      %v396 = vld [vmem:[%s223 + $0x98] sm:$0xff]
      %v397 = vld [vmem:[%s223 + $0xa0] sm:$0xff]
      %v398 = vld [vmem:[%s223 + $0xa8] sm:$0xff]
      %v399 = vld [vmem:[%s223 + $0xb0] sm:$0xff]
      %v400 = vld [vmem:[%s223 + $0xb8] sm:$0xff]
      %v401 = vld [vmem:[%s223 + $0xc0] sm:$0xff]
      %v402 = vld [vmem:[%s223 + $0xc8] sm:$0xff]
      %v403 = vld [vmem:[%s223 + $0xd0] sm:$0xff]
      %v404 = vld [vmem:[%s223 + $0xd8] sm:$0xff]
      %v405 = vld [vmem:[%s223 + $0xe0] sm:$0xff]
      %v406 = vld [vmem:[%s223 + $0xe8] sm:$0xff]
      %v407 = vld [vmem:[%s223 + $0xf0] sm:$0xff]
      %v408 = vld [vmem:[%s223 + $0xf8] sm:$0xff]
      %v409 = vld [vmem:[%s223 + $0x100] sm:$0xff]
      %v410 = vld [vmem:[%s223 + $0x108] sm:$0xff]
      %v411 = vld [vmem:[%s223 + $0x110] sm:$0xff]
      %v412 = vld [vmem:[%s223 + $0x118] sm:$0xff]
      %v413 = vld [vmem:[%s223 + $0x120] sm:$0xff]
      %v414 = vld [vmem:[%s223 + $0x128] sm:$0xff]
      %v415 = vld [vmem:[%s223 + $0x130] sm:$0xff]
      %v416 = vld [vmem:[%s223 + $0x138] sm:$0xff]
      %v417 = vld [vmem:[%s223 + $0x140] sm:$0xff]
      %v418 = vld [vmem:[%s223 + $0x148] sm:$0xff]
      %v419 = vld [vmem:[%s223 + $0x150] sm:$0xff]
      %v420 = vld [vmem:[%s223 + $0x158] sm:$0xff]
      %v421 = vld [vmem:[%s223 + $0x160] sm:$0xff]
      %v422 = vld [vmem:[%s223 + $0x168] sm:$0xff]
      %v423 = vld [vmem:[%s223 + $0x170] sm:$0xff]
      %v424 = vld [vmem:[%s223 + $0x178] sm:$0xff]
      %v425 = vld [vmem:[%s223 + $0x180] sm:$0xff]
      %v426 = vld [vmem:[%s223 + $0x188] sm:$0xff]
      %v427 = vld [vmem:[%s223 + $0x190] sm:$0xff]
      %v428 = vld [vmem:[%s223 + $0x198] sm:$0xff]
      %v429 = vld [vmem:[%s223 + $0x1a0] sm:$0xff]
      %v430 = vld [vmem:[%s223 + $0x1a8] sm:$0xff]
      %v431 = vld [vmem:[%s223 + $0x1b0] sm:$0xff]
      %v432 = vld [vmem:[%s223 + $0x1b8] sm:$0xff]
      %v433 = vld [vmem:[%s223 + $0x1c0] sm:$0xff]
      %v434 = vld [vmem:[%s223 + $0x1c8] sm:$0xff]
      %v435 = vld [vmem:[%s223 + $0x1d0] sm:$0xff]
      %v436 = vld [vmem:[%s223 + $0x1d8] sm:$0xff]
      %v437 = vld [vmem:[%s223 + $0x1e0] sm:$0xff]
      %v438 = vld [vmem:[%s223 + $0x1e8] sm:$0xff]
      %v439 = vld [vmem:[%s223 + $0x1f0] sm:$0xff]
      %v440 = vld [vmem:[%s223 + $0x1f8] sm:$0xff]
      %441 = vmatprep.subr.mxu0 %v378
      %442 = vmatpush1.msra.mxu0 %v377
      %443 = vmatprep.subr.mxu0 %v380
      %444 = vmatpush1.msra.mxu0 %v379
      %445 = vmatprep.subr.mxu0 %v382
      %446 = vmatpush1.msra.mxu0 %v381
      %447 = vmatprep.subr.mxu0 %v384
      %448 = vmatpush1.msra.mxu0 %v383
      %449 = vmatprep.subr.mxu0 %v386
      %450 = vmatpush1.msra.mxu0 %v385
      %451 = vmatprep.subr.mxu0 %v388
      %452 = vmatpush1.msra.mxu0 %v387
      %453 = vmatprep.subr.mxu0 %v390
      %454 = vmatpush1.msra.mxu0 %v389
      %455 = vmatprep.subr.mxu0 %v392
      %456 = vmatpush1.msra.mxu0 %v391
      %457 = vmatprep.subr.mxu0 %v394
      %458 = vmatpush1.msra.mxu0 %v393
      %459 = vmatprep.subr.mxu0 %v396
      %460 = vmatpush1.msra.mxu0 %v395
      %461 = vmatprep.subr.mxu0 %v398
      %462 = vmatpush1.msra.mxu0 %v397
      %463 = vmatprep.subr.mxu0 %v400
      %464 = vmatpush1.msra.mxu0 %v399
      %465 = vmatprep.subr.mxu0 %v402
      %466 = vmatpush1.msra.mxu0 %v401
      %467 = vmatprep.subr.mxu0 %v404
      %468 = vmatpush1.msra.mxu0 %v403
      %469 = vmatprep.subr.mxu0 %v406
      %470 = vmatpush1.msra.mxu0 %v405
      %471 = vmatprep.subr.mxu0 %v408
      %472 = vmatpush1.msra.mxu0 %v407
      %473 = vmatprep.subr.mxu0 %v410
      %474 = vmatpush1.msra.mxu0 %v409
      %475 = vmatprep.subr.mxu0 %v412
      %476 = vmatpush1.msra.mxu0 %v411
      %477 = vmatprep.subr.mxu0 %v414
      %478 = vmatpush1.msra.mxu0 %v413
      %479 = vmatprep.subr.mxu0 %v416
      %480 = vmatpush1.msra.mxu0 %v415
      %481 = vmatprep.subr.mxu0 %v418
      %482 = vmatpush1.msra.mxu0 %v417
      %483 = vmatprep.subr.mxu0 %v420
      %484 = vmatpush1.msra.mxu0 %v419
      %485 = vmatprep.subr.mxu0 %v422
      %486 = vmatpush1.msra.mxu0 %v421
      %487 = vmatprep.subr.mxu0 %v424
      %488 = vmatpush1.msra.mxu0 %v423
      %489 = vmatprep.subr.mxu0 %v426
      %490 = vmatpush1.msra.mxu0 %v425
      %491 = vmatprep.subr.mxu0 %v428
      %492 = vmatpush1.msra.mxu0 %v427
      %493 = vmatprep.subr.mxu0 %v430
      %494 = vmatpush1.msra.mxu0 %v429
      %495 = vmatprep.subr.mxu0 %v432
      %496 = vmatpush1.msra.mxu0 %v431
      %497 = vmatprep.subr.mxu0 %v434
      %498 = vmatpush1.msra.mxu0 %v433
      %499 = vmatprep.subr.mxu0 %v436
      %500 = vmatpush1.msra.mxu0 %v435
      %501 = vmatprep.subr.mxu0 %v438
      %502 = vmatpush1.msra.mxu0 %v437
      %503 = vmatprep.subr.mxu0 %v440
      %504 = vmatpush1.msra.mxu0 %v439
      %505 = vmatprep.mubr.f32.mxu0 %v374
      %506 = vmatmul.mubr.f32.gmra.mrb[0].mxu0 %v373
      %v507 = vpop.f32.mrb[0].mxu0
      %v508 = vadd.f32 0.0, %v507
      %v509 = vpop.f32.mrb[0].mxu0
      %v510 = vadd.f32 0.0, %v509
      %511 = vdwg.mxu0
      %v512 = vadd.f32 %v375, %v508
      %v513 = vadd.f32 %v376, %v510
      %514 = vst [vmem:[#allocation2] sm:$0xff] %v512
      %515 = vst [vmem:[#allocation2 + $0x8] sm:$0xff] %v513
      // Predicated region
      $region37: #{mlp_forward.1} parent=31 // pred_check
        %p516 = pneg %p230
      $region38: #{mlp_forward.1} parent=31 // pred_check_branch
        %518 = sbr.rel (%p516) target = $region40
      $region39: #{mlp_forward.1} parent=31 // pred_region
        %v519 = vld [vmem:[#allocation2] sm:$0xff]
        %v520 = vld [vmem:[#allocation2 + $0x8] sm:$0xff]
        %521 = vst [vmem:[%s229] sm:$0xff] %v519
        %522 = vst [vmem:[%s229 + $0x8] sm:$0xff] %v520
      $region40: #{mlp_forward.1} parent=31 // pred_fallthru
        _
      %p523 = scmp.lt.s32.totalorder %s18, 1
      %s524 = scalar_select %p523, %s18, 1
      %s525 = smul.addr %s524, 2
      %s526 = smul.addr %s525, 8
      %s527 = scalar_lea.vmem %s3, %s526
      // Predicated region
      $region41: #{mlp_forward.1} parent=31 // pred_check
        %p528 = pneg %p122
      $region42: #{mlp_forward.1} parent=31 // pred_check_branch
        %530 = sbr.rel (%p528) target = $region44
      $region43: #{mlp_forward.1} parent=31 // pred_region
        _
      $region44: #{mlp_forward.1} parent=31 // pred_fallthru
        _
    $region32: #{mlp_forward.1} parent=5 // pred_fallthru
      _
    %p531 = scmp.le.s32.totalorder 2, %s9
    // Predicated region
    $region45: #{mlp_forward.1} parent=5 // pred_check
      %p532 = pneg %p531
    $region46: #{mlp_forward.1} parent=5 // pred_check_branch
      %534 = sbr.rel (%p532) target = $region48
    $region47: #{mlp_forward.1} parent=5 // pred_region
      %s535 = ssub.s32 %s9, 2
      // Predicated region
      $region49: #{mlp_forward.1} parent=47 // pred_check
        %p536 = pneg %p128
      $region50: #{mlp_forward.1} parent=47 // pred_check_branch
        %538 = sbr.rel (%p536) target = $region52
      $region51: #{mlp_forward.1} parent=47 // pred_region
        %p539 = scmp.lt.s32.totalorder %s20, 1
        %s540 = scalar_select %p539, %s20, 1
        %s541 = smul.addr %s540, 2
        %s542 = smul.addr %s541, 8
        %s543 = scalar_lea.vmem %s3, %s542
      $region52: #{mlp_forward.1} parent=47 // pred_fallthru
        _
    $region48: #{mlp_forward.1} parent=5 // pred_fallthru
      _
  $region6: #{mlp_forward.1} parent=0 // loop_footer
    %s13 = sadd.s32 1, %s9
  $region7: #{mlp_forward.1} parent=0 // loop_footer_branch
    %8 = sbr.rel target = $region3
  $region8: #{mlp_forward.1} parent=0 // loop_exit
    _

</llo_original>
